<compile_context>
chip_gen: v7x
topology: tpu7x:2x2x1
jax: 0.10.0
libtpu: 0.0.40
codegen_flags: <defaults>
</compile_context>

<pallas_src>
import functools

import numpy as np
import jax
import jax.numpy as jnp
from jax import lax
from jax.experimental import pallas as pl
from jax.experimental.pallas import tpu as pltpu

EPS = 1e-5  # eps of diceCoeffv2


def _round_up(x, m):
    return ((x + m - 1) // m) * m


def _choose_hw_tile(hw, c, cap_bytes=4 * 1024 * 1024):
    # Per grid step ~ 2 inputs x 2 pipeline buffers x C x hw_tile x 4B.
    # Keep it a multiple of 128 and comfortably inside scoped VMEM on all chips
    # (v7x has only 64 MiB VMEM per TensorCore).
    max_lanes = max(128, (cap_bytes // (16 * c)) // 128 * 128)
    return min(_round_up(hw, 128), max_lanes)


def _miou_dice_kernel(pred_ref, gt_ref, out_ref,
                      conf_ref, tp_ref, pg_ref, dice_ref,
                      *, C, C_OH, N, n_hw, HW, hw_tile):
    """pred_ref / gt_ref : (1, C, hw_tile) VMEM tiles for (sample n, spatial tile k).

    conf_ref : VMEM (C_OH, C_OH) f32 confusion-matrix accumulator (rows=gt, cols=pred).
    tp_ref   : SMEM (1,) per-sample running sum of pred*gt.
    pg_ref   : SMEM (1,) per-sample running sum of pred + gt.
    dice_ref : SMEM (1,) running sum of per-sample dice coefficients.
    out_ref  : SMEM (1,) final scalar loss.
    """
    n = pl.program_id(0)   # batch index
    k = pl.program_id(1)   # spatial tile index (innermost)

    @pl.when(jnp.logical_and(n == 0, k == 0))
    def _init_global():
        conf_ref[...] = jnp.zeros_like(conf_ref)   # single vectorized zero store
        dice_ref[0] = jnp.float32(0.0)

    @pl.when(k == 0)
    def _init_sample():
        tp_ref[0] = jnp.float32(0.0)
        pg_ref[0] = jnp.float32(0.0)

    # Upcast inside the kernel (inputs stream in their native dtype).
    p = pred_ref[0].astype(jnp.float32)   # (C, hw_tile)
    g = gt_ref[0].astype(jnp.float32)     # (C, hw_tile)

    # ---- argmax over the channel (sublane) axis, np.argmax tie-breaking ----
    def argmax_rows(x):
        best_val = x[0:1, :]
        best_idx = jnp.zeros((1, hw_tile), dtype=jnp.int32)
        for c in range(1, C):
            row = x[c:c + 1, :]
            better = row > best_val          # first max wins, like np.argmax
            best_val = jnp.where(better, row, best_val)
            best_idx = jnp.where(better, jnp.int32(c), best_idx)
        return best_idx                      # (1, hw_tile) int32

    pred_cls = argmax_rows(p)
    gt_cls = argmax_rows(g)

    # ---- confusion matrix via one-hot matmul on the MXU ----
    class_iota = lax.broadcasted_iota(jnp.int32, (C_OH, hw_tile), 0)
    pred_oh = (class_iota == pred_cls).astype(jnp.float32)   # (C_OH, hw_tile)
    gt_oh = (class_iota == gt_cls).astype(jnp.float32)       # (C_OH, hw_tile)
    if HW % hw_tile != 0:
        # Zero-padded tail lanes of the last tile must not count as pixels.
        lane = lax.broadcasted_iota(jnp.int32, (1, hw_tile), 1)
        valid = (k * hw_tile + lane) < HW
        gt_oh = jnp.where(valid, gt_oh, 0.0)

    # conf[i, j] += #pixels with gt == i and pred == j  (Evaluator._generate_matrix)
    conf_ref[...] += lax.dot_general(
        gt_oh, pred_oh,
        dimension_numbers=(((1,), (1,)), ((), ())),   # gt_oh @ pred_oh.T
        preferred_element_type=jnp.float32)

    # ---- dice statistics (padded lanes are all-zero -> contribute nothing) ----
    tp_ref[0] = tp_ref[0] + jnp.sum(p * g)
    pg_ref[0] = pg_ref[0] + jnp.sum(p + g)   # ps + gs as one reduction

    @pl.when(k == n_hw - 1)
    def _end_sample():
        # diceCoeffv2: (2*tp + eps) / (2*tp + fp + fn + eps) = (2*tp + eps)/(ps + gs + eps)
        dice_ref[0] = dice_ref[0] + (2.0 * tp_ref[0] + EPS) / (pg_ref[0] + EPS)

    @pl.when(jnp.logical_and(n == N - 1, k == n_hw - 1))
    def _finalize():
        conf = conf_ref[...]                                   # (C_OH, C_OH)
        rid = lax.broadcasted_iota(jnp.int32, (C_OH, C_OH), 0)
        cid = lax.broadcasted_iota(jnp.int32, (C_OH, C_OH), 1)
        eye = rid == cid
        rs = jnp.sum(conf, axis=1, keepdims=True)              # (C_OH, 1)  row sums
        cs = jnp.sum(conf, axis=0, keepdims=True)              # (1, C_OH)  col sums
        # Per-class diag and union, laid out as (1, C_OH) row vectors.
        diag = jnp.sum(jnp.where(eye, conf, 0.0), axis=0, keepdims=True)
        union = jnp.sum(jnp.where(eye, rs + cs - conf, 0.0), axis=0, keepdims=True)
        cls_id = lax.broadcasted_iota(jnp.int32, (1, C_OH), 1)
        # np.nanmean semantics: ignore classes with zero union (and padded classes).
        valid_cls = jnp.logical_and(cls_id < C, union > 0.0)
        iou = diag / jnp.where(valid_cls, union, 1.0)
        iou_sum = jnp.sum(jnp.where(valid_cls, iou, 0.0))
        n_valid = jnp.sum(jnp.where(valid_cls, 1.0, 0.0))
        miou = iou_sum / n_valid                               # NaN if no valid class
        miou_score = 1.0 - miou
        dice_score = 1.0 - dice_ref[0] / jnp.float32(N)
        out_ref[0] = miou_score + dice_score


def miou_dice_loss(pred, gt, num_classes=2, hw_tile=None):
    """Pallas implementation of MIoU_Dice_loss.forward (pred, gt are NCHW)."""
    N, C, H, W = pred.shape
    assert gt.shape == (N, C, H, W)
    assert C == num_classes
    HW = H * W

    # Reshape only (no dtype cast in the wrapper — upcast happens in-kernel).
    pred3 = pred.reshape(N, C, HW)
    gt3 = gt.reshape(N, C, HW)

    if hw_tile is None:
        hw_tile = _choose_hw_tile(HW, C)
    else:
        hw_tile = _round_up(hw_tile, 128)
    n_hw = -(-HW // hw_tile)
    HW_pad = n_hw * hw_tile
    if HW_pad != HW:
        pad = HW_pad - HW
        pred3 = jnp.pad(pred3, ((0, 0), (0, 0), (0, pad)))
        gt3 = jnp.pad(gt3, ((0, 0), (0, 0), (0, pad)))

    C_OH = _round_up(C, 8)   # padded class axis for one-hots / conf accumulator

    kernel = functools.partial(
        _miou_dice_kernel,
        C=C, C_OH=C_OH, N=N, n_hw=n_hw, HW=HW, hw_tile=hw_tile)

    out = pl.pallas_call(
        kernel,
        out_shape=jax.ShapeDtypeStruct((1,), jnp.float32),
        grid_spec=pltpu.PrefetchScalarGridSpec(
            num_scalar_prefetch=0,
            grid=(N, n_hw),
            in_specs=[
                pl.BlockSpec((1, C, hw_tile), lambda n, k: (n, 0, k)),
                pl.BlockSpec((1, C, hw_tile), lambda n, k: (n, 0, k)),
            ],
            out_specs=pl.BlockSpec(memory_space=pltpu.SMEM),
            scratch_shapes=[
                pltpu.VMEM((C_OH, C_OH), jnp.float32),   # confusion-matrix accumulator
                pltpu.SMEM((1,), jnp.float32),           # per-sample tp
                pltpu.SMEM((1,), jnp.float32),           # per-sample ps + gs
                pltpu.SMEM((1,), jnp.float32),           # running dice sum
            ],
        ),
        compiler_params=pltpu.CompilerParams(
            # Accumulators carried across both grid axes -> fully serial grid.
            dimension_semantics=("arbitrary", "arbitrary")),
    )(pred3, gt3)
    return out[0]


def _reference(pred, gt, num_classes, eps=EPS):
    """Pure numpy reference reproducing the PyTorch module's semantics."""
    pred_np = np.asarray(pred, dtype=np.float64)
    gt_np = np.asarray(gt, dtype=np.float64)
    pred_cls = np.argmax(pred_np, axis=1)
    gt_cls = np.argmax(gt_np, axis=1)
    label = num_classes * gt_cls.astype(np.int64) + pred_cls
    count = np.bincount(label.reshape(-1), minlength=num_classes ** 2)
    conf = count.reshape(num_classes, num_classes).astype(np.float64)
    diag = np.diag(conf)
    union = conf.sum(axis=1) + conf.sum(axis=0) - diag
    with np.errstate(invalid="ignore", divide="ignore"):
        iou = diag / union
    miou = np.nanmean(iou)
    N = pred_np.shape[0]
    pf = pred_np.reshape(N, -1)
    gf = gt_np.reshape(N, -1)
    tp = (pf * gf).sum(axis=1)
    fp = pf.sum(axis=1) - tp
    fn = gf.sum(axis=1) - tp
    dice = (2 * tp + eps) / (2 * tp + fp + fn + eps)
    return (1.0 - miou) + (1.0 - dice.sum() / N)


if __name__ == "__main__":
    key = jax.random.PRNGKey(0)
    k1, k2, k3, k4 = jax.random.split(key, 4)

    # Primary small test (module default num_classes=2), NCHW layout.
    N, C, H, W = 2, 2, 16, 16
    pred = jax.random.normal(k1, (N, C, H, W), dtype=jnp.float32)
    gt_labels = jax.random.randint(k2, (N, H, W), 0, C)
    gt = jax.nn.one_hot(gt_labels, C, axis=1, dtype=jnp.float32)  # NCHW one-hot

    loss = jax.block_until_ready(miou_dice_loss(pred, gt, num_classes=C))
    ref = _reference(pred, gt, C)
    assert np.allclose(np.asarray(loss), ref, atol=1e-4, rtol=1e-4), (loss, ref)

    # Second test: exercises spatial tiling + zero-pad masking (HW=320, tile=128).
    N2, C2, H2, W2 = 2, 3, 16, 20
    pred2 = jax.random.normal(k3, (N2, C2, H2, W2), dtype=jnp.float32)
    gt_labels2 = jax.random.randint(k4, (N2, H2, W2), 0, C2)
    gt2 = jax.nn.one_hot(gt_labels2, C2, axis=1, dtype=jnp.float32)

    loss2 = jax.block_until_ready(
        miou_dice_loss(pred2, gt2, num_classes=C2, hw_tile=128))
    ref2 = _reference(pred2, gt2, C2)
    assert np.allclose(np.asarray(loss2), ref2, atol=1e-4, rtol=1e-4), (loss2, ref2)

    print("KERNEL_OK")
</pallas_src>

<mosaic_0001>
module attributes {stable_mosaic.version = 11 : i64} {
  func.func @_miou_dice_kernel(%arg0: i32, %arg1: i32, %arg2: memref<1x2x256xf32, #tpu.memory_space<vmem>>, %arg3: memref<1x2x256xf32, #tpu.memory_space<vmem>>, %arg4: memref<1xf32, #tpu.memory_space<smem>>, %arg5: memref<8x8xf32, #tpu.memory_space<vmem>>, %arg6: memref<1xf32, #tpu.memory_space<smem>>, %arg7: memref<1xf32, #tpu.memory_space<smem>>, %arg8: memref<1xf32, #tpu.memory_space<smem>>) attributes {dimension_semantics = [#tpu.dimension_semantics<arbitrary>, #tpu.dimension_semantics<arbitrary>], iteration_bounds = array<i64: 2, 1>, scalar_prefetch = 0 : i64, scratch_operands = 4 : i64, tpu.core_type = #tpu.core_type<tc>, window_params = [{transform_indices = @transform_0, window_bounds = array<i64: 1, 2, 256>}, {transform_indices = @transform_1, window_bounds = array<i64: 1, 2, 256>}, {transform_indices = @transform_2, window_bounds = array<i64: 1>}]} {
    %c0_i32 = arith.constant 0 : i32
    %0 = arith.cmpi eq, %arg0, %c0_i32 : i32
    %c0_i32_0 = arith.constant 0 : i32
    %1 = arith.cmpi eq, %arg1, %c0_i32_0 : i32
    %2 = arith.andi %0, %1 : i1
    %3 = arith.extui %2 : i1 to i32
    %c0_i32_1 = arith.constant 0 : i32
    %4 = arith.cmpi ne, %3, %c0_i32_1 : i32
    scf.if %4 {
      %cst_27 = arith.constant 0.000000e+00 : f32
      %61 = vector.broadcast %cst_27 : f32 to vector<8x8xf32>
      %c0_28 = arith.constant 0 : index
      %c0_29 = arith.constant 0 : index
      %62 = vector.load %arg5[%c0_28, %c0_29] : memref<8x8xf32, #tpu.memory_space<vmem>>, vector<8x8xf32>
      tpu.vector_store %arg5[%c0_28, %c0_29], %61 {strides = array<i32>} : memref<8x8xf32, #tpu.memory_space<vmem>>, vector<8x8xf32>,
      %cst_30 = arith.constant 0.000000e+00 : f32
      %c0_31 = arith.constant 0 : index
      %63 = memref.load %arg8[%c0_31] : memref<1xf32, #tpu.memory_space<smem>>
      memref.store %cst_30, %arg8[%c0_31] : memref<1xf32, #tpu.memory_space<smem>>
    } else {
    }
    %c0_i32_2 = arith.constant 0 : i32
    %5 = arith.cmpi eq, %arg1, %c0_i32_2 : i32
    %6 = arith.extui %5 : i1 to i32
    %c0_i32_3 = arith.constant 0 : i32
    %7 = arith.cmpi ne, %6, %c0_i32_3 : i32
    scf.if %7 {
      %cst_27 = arith.constant 0.000000e+00 : f32
      %c0_28 = arith.constant 0 : index
      %61 = memref.load %arg6[%c0_28] : memref<1xf32, #tpu.memory_space<smem>>
      memref.store %cst_27, %arg6[%c0_28] : memref<1xf32, #tpu.memory_space<smem>>
      %cst_29 = arith.constant 0.000000e+00 : f32
      %c0_30 = arith.constant 0 : index
      %62 = memref.load %arg7[%c0_30] : memref<1xf32, #tpu.memory_space<smem>>
      memref.store %cst_29, %arg7[%c0_30] : memref<1xf32, #tpu.memory_space<smem>>
    } else {
    }
    %c0 = arith.constant 0 : index
    %c0_4 = arith.constant 0 : index
    %c0_5 = arith.constant 0 : index
    %8 = vector.load %arg2[%c0, %c0_4, %c0_5] : memref<1x2x256xf32, #tpu.memory_space<vmem>>, vector<1x2x256xf32>
    %9 = vector.shape_cast %8 : vector<1x2x256xf32> to vector<2x256xf32>
    %c0_6 = arith.constant 0 : index
    %c0_7 = arith.constant 0 : index
    %c0_8 = arith.constant 0 : index
    %10 = vector.load %arg3[%c0_6, %c0_7, %c0_8] : memref<1x2x256xf32, #tpu.memory_space<vmem>>, vector<1x2x256xf32>
    %11 = vector.shape_cast %10 : vector<1x2x256xf32> to vector<2x256xf32>
    %12 = vector.extract_strided_slice %9 {offsets = [0, 0], sizes = [1, 256], strides = [1, 1]} : vector<2x256xf32> to vector<1x256xf32>
    %c0_i32_9 = arith.constant 0 : i32
    %13 = vector.broadcast %c0_i32_9 : i32 to vector<1x256xi32>
    %14 = vector.extract_strided_slice %9 {offsets = [1, 0], sizes = [1, 256], strides = [1, 1]} : vector<2x256xf32> to vector<1x256xf32>
    %15 = arith.cmpf ogt, %14, %12 : vector<1x256xf32>
    %c1_i32 = arith.constant 1 : i32
    %16 = vector.broadcast %c1_i32 : i32 to vector<1x256xi32>
    %17 = arith.select %15, %16, %13 : vector<1x256xi1>, vector<1x256xi32>
    %18 = vector.extract_strided_slice %11 {offsets = [0, 0], sizes = [1, 256], strides = [1, 1]} : vector<2x256xf32> to vector<1x256xf32>
    %c0_i32_10 = arith.constant 0 : i32
    %19 = vector.broadcast %c0_i32_10 : i32 to vector<1x256xi32>
    %20 = vector.extract_strided_slice %11 {offsets = [1, 0], sizes = [1, 256], strides = [1, 1]} : vector<2x256xf32> to vector<1x256xf32>
    %21 = arith.cmpf ogt, %20, %18 : vector<1x256xf32>
    %c1_i32_11 = arith.constant 1 : i32
    %22 = vector.broadcast %c1_i32_11 : i32 to vector<1x256xi32>
    %23 = arith.select %21, %22, %19 : vector<1x256xi1>, vector<1x256xi32>
    %24 = tpu.iota {dimensions = array<i32: 0>} : vector<8x256xi32>
    %25 = vector.broadcast %17 : vector<1x256xi32> to vector<8x256xi32>
    %26 = arith.cmpi eq, %24, %25 : vector<8x256xi32>
    %27 = arith.extui %26 : vector<8x256xi1> to vector<8x256xi32>
    %28 = arith.sitofp %27 : vector<8x256xi32> to vector<8x256xf32>
    %29 = vector.broadcast %23 : vector<1x256xi32> to vector<8x256xi32>
    %30 = arith.cmpi eq, %24, %29 : vector<8x256xi32>
    %31 = arith.extui %30 : vector<8x256xi1> to vector<8x256xi32>
    %32 = arith.sitofp %31 : vector<8x256xi32> to vector<8x256xf32>
    %c0_12 = arith.constant 0 : index
    %c0_13 = arith.constant 0 : index
    %33 = vector.load %arg5[%c0_12, %c0_13] : memref<8x8xf32, #tpu.memory_space<vmem>>, vector<8x8xf32>
    %cst = arith.constant dense<0.000000e+00> : vector<8x8xf32>
    %34 = tpu.matmul %32, %28, %cst {dimension_numbers = #tpu.dot_dimension_numbers<[1], [1], [0], [0], [0, 0, 1, 0], [], []>} : vector<8x256xf32>, vector<8x256xf32>, vector<8x8xf32> -> vector<8x8xf32>
    %35 = arith.addf %33, %34 : vector<8x8xf32>
    %c0_14 = arith.constant 0 : index
    %c0_15 = arith.constant 0 : index
    %36 = vector.load %arg5[%c0_14, %c0_15] : memref<8x8xf32, #tpu.memory_space<vmem>>, vector<8x8xf32>
    tpu.vector_store %arg5[%c0_14, %c0_15], %35 {strides = array<i32>} : memref<8x8xf32, #tpu.memory_space<vmem>>, vector<8x8xf32>,
    %c0_16 = arith.constant 0 : index
    %37 = memref.load %arg6[%c0_16] : memref<1xf32, #tpu.memory_space<smem>>
    %38 = arith.mulf %9, %11 : vector<2x256xf32>
    %39 = vector.shape_cast %38 : vector<2x256xf32> to vector<1x2x256xf32>
    %cst_17 = arith.constant dense<0.000000e+00> : vector<1xf32>
    %40 = vector.multi_reduction <add>, %39, %cst_17 [1, 2] : vector<1x2x256xf32> to vector<1xf32>
    %41 = vector.shape_cast %40 : vector<1xf32> to vector<1x1x1xf32>
    %42 = vector.extract %41[0, 0, 0] : f32 from vector<1x1x1xf32>
    %43 = arith.addf %37, %42 : f32
    %c0_18 = arith.constant 0 : index
    %44 = memref.load %arg6[%c0_18] : memref<1xf32, #tpu.memory_space<smem>>
    memref.store %43, %arg6[%c0_18] : memref<1xf32, #tpu.memory_space<smem>>
    %c0_19 = arith.constant 0 : index
    %45 = memref.load %arg7[%c0_19] : memref<1xf32, #tpu.memory_space<smem>>
    %46 = arith.addf %9, %11 : vector<2x256xf32>
    %47 = vector.shape_cast %46 : vector<2x256xf32> to vector<1x2x256xf32>
    %cst_20 = arith.constant dense<0.000000e+00> : vector<1xf32>
    %48 = vector.multi_reduction <add>, %47, %cst_20 [1, 2] : vector<1x2x256xf32> to vector<1xf32>
    %49 = vector.shape_cast %48 : vector<1xf32> to vector<1x1x1xf32>
    %50 = vector.extract %49[0, 0, 0] : f32 from vector<1x1x1xf32>
    %51 = arith.addf %45, %50 : f32
    %c0_21 = arith.constant 0 : index
    %52 = memref.load %arg7[%c0_21] : memref<1xf32, #tpu.memory_space<smem>>
    memref.store %51, %arg7[%c0_21] : memref<1xf32, #tpu.memory_space<smem>>
    %c0_i32_22 = arith.constant 0 : i32
    %53 = arith.cmpi eq, %arg1, %c0_i32_22 : i32
    %54 = arith.extui %53 : i1 to i32
    %c0_i32_23 = arith.constant 0 : i32
    %55 = arith.cmpi ne, %54, %c0_i32_23 : i32
    scf.if %55 {
      %c0_27 = arith.constant 0 : index
      %61 = memref.load %arg8[%c0_27] : memref<1xf32, #tpu.memory_space<smem>>
      %c0_28 = arith.constant 0 : index
      %62 = memref.load %arg6[%c0_28] : memref<1xf32, #tpu.memory_space<smem>>
      %cst_29 = arith.constant 2.000000e+00 : f32
      %63 = arith.mulf %cst_29, %62 : f32
      %cst_30 = arith.constant 9.99999974E-6 : f32
      %64 = arith.addf %63, %cst_30 : f32
      %c0_31 = arith.constant 0 : index
      %65 = memref.load %arg7[%c0_31] : memref<1xf32, #tpu.memory_space<smem>>
      %cst_32 = arith.constant 9.99999974E-6 : f32
      %66 = arith.addf %65, %cst_32 : f32
      %67 = arith.divf %64, %66 : f32
      %68 = arith.addf %61, %67 : f32
      %c0_33 = arith.constant 0 : index
      %69 = memref.load %arg8[%c0_33] : memref<1xf32, #tpu.memory_space<smem>>
      memref.store %68, %arg8[%c0_33] : memref<1xf32, #tpu.memory_space<smem>>
    } else {
    }
    %c1_i32_24 = arith.constant 1 : i32
    %56 = arith.cmpi eq, %arg0, %c1_i32_24 : i32
    %c0_i32_25 = arith.constant 0 : i32
    %57 = arith.cmpi eq, %arg1, %c0_i32_25 : i32
    %58 = arith.andi %56, %57 : i1
    %59 = arith.extui %58 : i1 to i32
    %c0_i32_26 = arith.constant 0 : i32
    %60 = arith.cmpi ne, %59, %c0_i32_26 : i32
    scf.if %60 {
      %c0_27 = arith.constant 0 : index
      %c0_28 = arith.constant 0 : index
      %61 = vector.load %arg5[%c0_27, %c0_28] : memref<8x8xf32, #tpu.memory_space<vmem>>, vector<8x8xf32>
      %62 = tpu.iota {dimensions = array<i32: 0>} : vector<8x8xi32>
      %63 = tpu.iota {dimensions = array<i32: 1>} : vector<8x8xi32>
      %64 = arith.cmpi eq, %62, %63 : vector<8x8xi32>
      %cst_29 = arith.constant dense<0.000000e+00> : vector<8xf32>
      %65 = vector.multi_reduction <add>, %61, %cst_29 [1] : vector<8x8xf32> to vector<8xf32>
      %66 = vector.shape_cast %65 : vector<8xf32> to vector<8x1xf32>
      %cst_30 = arith.constant dense<0.000000e+00> : vector<8xf32>
      %67 = vector.multi_reduction <add>, %61, %cst_30 [0] : vector<8x8xf32> to vector<8xf32>
      %68 = vector.shape_cast %67 : vector<8xf32> to vector<1x8xf32>
      %cst_31 = arith.constant 0.000000e+00 : f32
      %69 = vector.broadcast %cst_31 : f32 to vector<8x8xf32>
      %70 = arith.select %64, %61, %69 : vector<8x8xi1>, vector<8x8xf32>
      %cst_32 = arith.constant dense<0.000000e+00> : vector<8xf32>
      %71 = vector.multi_reduction <add>, %70, %cst_32 [0] : vector<8x8xf32> to vector<8xf32>
      %72 = vector.shape_cast %71 : vector<8xf32> to vector<1x8xf32>
      %73 = vector.broadcast %66 : vector<8x1xf32> to vector<8x8xf32>
      %74 = vector.broadcast %68 : vector<1x8xf32> to vector<8x8xf32>
      %75 = arith.addf %73, %74 : vector<8x8xf32>
      %76 = arith.subf %75, %61 : vector<8x8xf32>
      %cst_33 = arith.constant 0.000000e+00 : f32
      %77 = vector.broadcast %cst_33 : f32 to vector<8x8xf32>
      %78 = arith.select %64, %76, %77 : vector<8x8xi1>, vector<8x8xf32>
      %cst_34 = arith.constant dense<0.000000e+00> : vector<8xf32>
      %79 = vector.multi_reduction <add>, %78, %cst_34 [0] : vector<8x8xf32> to vector<8xf32>
      %80 = vector.shape_cast %79 : vector<8xf32> to vector<1x8xf32>
      %81 = tpu.iota {dimensions = array<i32: 1>} : vector<1x8xi32>
      %c2_i32 = arith.constant 2 : i32
      %82 = vector.broadcast %c2_i32 : i32 to vector<1x8xi32>
      %83 = arith.cmpi slt, %81, %82 : vector<1x8xi32>
      %cst_35 = arith.constant 0.000000e+00 : f32
      %84 = vector.broadcast %cst_35 : f32 to vector<1x8xf32>
      %85 = arith.cmpf ogt, %80, %84 : vector<1x8xf32>
      %86 = arith.andi %83, %85 : vector<1x8xi1>
      %cst_36 = arith.constant 1.000000e+00 : f32
      %87 = vector.broadcast %cst_36 : f32 to vector<1x8xf32>
      %88 = arith.select %86, %80, %87 : vector<1x8xi1>, vector<1x8xf32>
      %89 = arith.divf %72, %88 : vector<1x8xf32>
      %cst_37 = arith.constant 0.000000e+00 : f32
      %90 = vector.broadcast %cst_37 : f32 to vector<1x8xf32>
      %91 = arith.select %86, %89, %90 : vector<1x8xi1>, vector<1x8xf32>
      %92 = vector.shape_cast %91 : vector<1x8xf32> to vector<1x1x8xf32>
      %cst_38 = arith.constant dense<0.000000e+00> : vector<1xf32>
      %93 = vector.multi_reduction <add>, %92, %cst_38 [1, 2] : vector<1x1x8xf32> to vector<1xf32>
      %94 = vector.shape_cast %93 : vector<1xf32> to vector<1x1x1xf32>
      %95 = vector.extract %94[0, 0, 0] : f32 from vector<1x1x1xf32>
      %cst_39 = arith.constant 1.000000e+00 : f32
      %cst_40 = arith.constant 0.000000e+00 : f32
      %96 = vector.broadcast %cst_39 : f32 to vector<1x8xf32>
      %97 = vector.broadcast %cst_40 : f32 to vector<1x8xf32>
      %98 = arith.select %86, %96, %97 : vector<1x8xi1>, vector<1x8xf32>
      %99 = vector.shape_cast %98 : vector<1x8xf32> to vector<1x1x8xf32>
      %cst_41 = arith.constant dense<0.000000e+00> : vector<1xf32>
      %100 = vector.multi_reduction <add>, %99, %cst_41 [1, 2] : vector<1x1x8xf32> to vector<1xf32>
      %101 = vector.shape_cast %100 : vector<1xf32> to vector<1x1x1xf32>
      %102 = vector.extract %101[0, 0, 0] : f32 from vector<1x1x1xf32>
      %103 = arith.divf %95, %102 : f32
      %cst_42 = arith.constant 1.000000e+00 : f32
      %104 = arith.subf %cst_42, %103 : f32
      %c0_43 = arith.constant 0 : index
      %105 = memref.load %arg8[%c0_43] : memref<1xf32, #tpu.memory_space<smem>>
      %cst_44 = arith.constant 2.000000e+00 : f32
      %106 = arith.divf %105, %cst_44 : f32
      %cst_45 = arith.constant 1.000000e+00 : f32
      %107 = arith.subf %cst_45, %106 : f32
      %108 = arith.addf %104, %107 : f32
      %c0_46 = arith.constant 0 : index
      %109 = memref.load %arg4[%c0_46] : memref<1xf32, #tpu.memory_space<smem>>
      memref.store %108, %arg4[%c0_46] : memref<1xf32, #tpu.memory_space<smem>>
    } else {
    }
    return
  }
  func.func @transform_0(%arg0: i32, %arg1: i32) -> (i32, i32, i32) {
    %c0_i32 = arith.constant 0 : i32
    %c0_i32_0 = arith.constant 0 : i32
    return %arg0, %c0_i32, %arg1 : i32, i32, i32
  }
  func.func @transform_1(%arg0: i32, %arg1: i32) -> (i32, i32, i32) {
    %c0_i32 = arith.constant 0 : i32
    %c0_i32_0 = arith.constant 0 : i32
    return %arg0, %c0_i32, %arg1 : i32, i32, i32
  }
  func.func @transform_2(%arg0: i32, %arg1: i32) -> i32 {
    %c0_i32 = arith.constant 0 : i32
    %c0_i32_0 = arith.constant 0 : i32
    return %c0_i32 : i32
  }
}

</mosaic_0001>

<llo_original>
// kernel: tpu_custom_call.1
$region0: #{tpu_custom_call.1}
  #allocation0 [shape = 'u32[]', space=smem, size = 0x4, offset = 0x4, fixed_abs, tag = 'smem constant byte address 0x4 - core index']
  #allocation1 [shape = 'u32[144,128]{1,0:T(1,128)}', space=vmem, size = 0x12000, scoped, tag = 'internal scratch']
  #allocation2 [shape = 'f32[8,8]{1,0:T(8,128)}', space=vmem, size = 0x1000, scoped, tag = 'scratch operand']
  #allocation3 [shape = 'f32[1]{0:T(128)}', space=smem, size = 0x200, scoped, tag = 'scratch operand']
  #allocation4 [shape = 'f32[1]{0:T(128)}', space=smem, size = 0x200, scoped, tag = 'scratch operand']
  #allocation5 [shape = 'f32[1]{0:T(128)}', space=smem, size = 0x200, scoped, tag = 'scratch operand']
  %s0 = inlined_call_operand.hbm [shape: f32[2,2,256], index: 0, kind: input, shape index: {}]
  %s1 = inlined_call_operand.hbm [shape: f32[2,2,256], index: 1, kind: input, shape index: {}]
  %s2 = inlined_call_operand.hbm [shape: f32[1], index: 2, kind: output, shape index: {}]
  %s3 = sld [smem:[#allocation0]]
  $region65: #{tpu_custom_call.1} parent=0
    _
  %s5 = ssub.s32 1, %s3
  %s6 = scalar_select 0, %s5, %s3
  $region1: #{tpu_custom_call.1} parent=0
    #allocation6 [shape = 'u8[4096]{0}', space=vmem, size = 0x1000, scoped, tag = 'input window, operand 0']
    #allocation7 [shape = 's32[2]{0}', space=sflag, size = 0x8, scoped, tag = 'scoped memory for tpu_custom_call.1']
    #allocation8 [shape = 's32[2]{0}', space=sflag, size = 0x8, scoped, tag = 'scoped memory for tpu_custom_call.1']
    #allocation9 [shape = 'u8[4096]{0}', space=vmem, size = 0x1000, scoped, tag = 'input window, operand 1']
    #allocation10 [shape = 's32[2]{0}', space=sflag, size = 0x8, scoped, tag = 'scoped memory for tpu_custom_call.1']
    #allocation11 [shape = 'u8[512]{0}', space=smem, size = 0x200, scoped, tag = 'output window, operand 0, single buffered']
    %7 = vsyncpa [#allocation7], 0
    %s8 = scalar_lea.sflag [#allocation7], 1
    %9 = vsyncpa %s8, 0
    %10 = vsyncpa [#allocation10], 0
    %s11 = scalar_lea.sflag [#allocation10], 1
    %12 = vsyncpa %s11, 0
    %13 = vsyncpa [#allocation8], 0
    loop: start=0, step=1, limit=4
    $region2: #{tpu_custom_call.1} parent=1 // loop_pre_header
      _
    $region3: #{tpu_custom_call.1} parent=1 // loop_header
      %s15 = sphi 0, %s19
      %p16 = scmp.ge.s32.totalorder %s15, 4
      %s22 = sphi 0, %s34
      %s23 = sphi 0, %s30
      %s24 = sphi 0, %s22
      %s25 = sphi 0, %s23
      %s26 = sphi 0, %s24
      %s27 = sphi 0, %s25
      %s39 = sphi 0, %s41
      %s42 = sphi 0, %s39
      %s43 = sphi 0, %s42
      %s59 = sphi 0, %s43
      %s67 = sphi 0, %s69
      %s70 = sphi 0, %s67
      %s71 = sphi 0, %s70
      %s87 = sphi 0, %s71
      %s91 = sphi 0, %s91
      %s93 = sphi 0, %s91
      %s94 = sphi 0, %s93
      %s108 = sphi 0, %s94
    $region4: #{tpu_custom_call.1} parent=1 // loop_header_branch
      %18 = sbr.rel (%p16) target = $region8
    $region5: #{tpu_custom_call.1} parent=1 // loop_body
      %s20 = ssub.s32 %s15, 1
      %s21 = ssub.s32 %s15, 2
      %s28 = sadd.s32 1, %s23
      %p29 = scmp.ge.s32.totalorder %s28, 1
      %s30 = scalar_select %p29, 0, %s28
      %s31 = sadd.s32 1, %s22
      %s32 = scalar_select %p29, %s31, %s22
      %p33 = scmp.ge.s32.totalorder %s32, 2
      %s34 = scalar_select %p33, 0, %s32
      %s35 = ssub.s32 %s22, %s34
      %s36 = ssub.s32 %s23, %s30
      %s37 = sor.u32 %s35, %s36
      %p38 = scmp.eq.s32.totalorder %s37, 0
      %s40 = sadd.s32 %s39, 1
      %s41 = scalar_select %p38, %s39, %s40
      %p44 = pneg %p38
      %p45 = scmp.eq.s32.totalorder %s15, 1
      %p46 = por %p44, %p45
      %p47 = scmp.ne.s32.totalorder %s39, %s42
      %p48 = scmp.eq.s32.totalorder %s15, 0
      %p49 = por %p47, %p48
      %p50 = scmp.ne.s32.totalorder %s39, %s42
      %p51 = scmp.eq.s32.totalorder %s20, 1
      %p52 = por %p50, %p51
      %p53 = scmp.ne.s32.totalorder %s42, %s43
      %p54 = scmp.eq.s32.totalorder %s20, 0
      %p55 = por %p53, %p54
      %p56 = scmp.ne.s32.totalorder %s42, %s43
      %p57 = scmp.eq.s32.totalorder %s21, 1
      %p58 = por %p56, %p57
      %p60 = scmp.ne.s32.totalorder %s43, %s59
      %p61 = scmp.eq.s32.totalorder %s21, 0
      %p62 = por %p60, %p61
      %s63 = ssub.s32 %s22, %s34
      %s64 = ssub.s32 %s23, %s30
      %s65 = sor.u32 %s63, %s64
      %p66 = scmp.eq.s32.totalorder %s65, 0
      %s68 = sadd.s32 %s67, 1
      %s69 = scalar_select %p66, %s67, %s68
      %p72 = pneg %p66
      %p73 = scmp.eq.s32.totalorder %s15, 1
      %p74 = por %p72, %p73
      %p75 = scmp.ne.s32.totalorder %s67, %s70
      %p76 = scmp.eq.s32.totalorder %s15, 0
      %p77 = por %p75, %p76
      %p78 = scmp.ne.s32.totalorder %s67, %s70
      %p79 = scmp.eq.s32.totalorder %s20, 1
      %p80 = por %p78, %p79
      %p81 = scmp.ne.s32.totalorder %s70, %s71
      %p82 = scmp.eq.s32.totalorder %s20, 0
      %p83 = por %p81, %p82
      %p84 = scmp.ne.s32.totalorder %s70, %s71
      %p85 = scmp.eq.s32.totalorder %s21, 1
      %p86 = por %p84, %p85
      %p88 = scmp.ne.s32.totalorder %s71, %s87
      %p89 = scmp.eq.s32.totalorder %s21, 0
      %p90 = por %p88, %p89
      %s92 = sadd.s32 %s91, 1
      %p95 = scmp.eq.s32.totalorder %s15, 1
      %p96 = scmp.ne.s32.totalorder %s91, %s93
      %p97 = scmp.eq.s32.totalorder %s15, 0
      %p98 = por %p96, %p97
      %p99 = scmp.ne.s32.totalorder %s91, %s93
      %p100 = scmp.eq.s32.totalorder %s20, 1
      %p101 = por %p99, %p100
      %p102 = scmp.ne.s32.totalorder %s93, %s94
      %p103 = scmp.eq.s32.totalorder %s20, 0
      %p104 = por %p102, %p103
      %p105 = scmp.ne.s32.totalorder %s93, %s94
      %p106 = scmp.eq.s32.totalorder %s21, 1
      %p107 = por %p105, %p106
      %p109 = scmp.ne.s32.totalorder %s94, %s108
      %p110 = scmp.eq.s32.totalorder %s21, 0
      %p111 = por %p109, %p110
      %p112 = scmp.le.s32.totalorder 1, %s15
      %p113 = scmp.lt.s32.totalorder %s15, 3
      %p114 = pnand %p112, %p113
      %p115 = pneg %p114
      // Predicated region
      $region9: #{tpu_custom_call.1} parent=5 // pred_check
        _
      $region10: #{tpu_custom_call.1} parent=5 // pred_check_branch
        %117 = sbr.rel (%p114) target = $region12
      $region11: #{tpu_custom_call.1} parent=5 // pred_region
        %s118 = ssub.s32 %s15, 1
      $region12: #{tpu_custom_call.1} parent=5 // pred_fallthru
        _
      %p119 = scmp.lt.s32.totalorder %s15, 2
      // Predicated region
      $region13: #{tpu_custom_call.1} parent=5 // pred_check
        %p120 = pneg %p119
      $region14: #{tpu_custom_call.1} parent=5 // pred_check_branch
        %122 = sbr.rel (%p120) target = $region16
      $region15: #{tpu_custom_call.1} parent=5 // pred_region
        // Predicated region
        $region17: #{tpu_custom_call.1} parent=15 // pred_check
          %p123 = pneg %p49
        $region18: #{tpu_custom_call.1} parent=15 // pred_check_branch
          %125 = sbr.rel (%p123) target = $region20
        $region19: #{tpu_custom_call.1} parent=15 // pred_region
          %s126 = sand.u32 %s39, 1
          %s127 = scalar_lea.sflag [#allocation7], %s126
          %s128 = sand.u32 %s39, 1
          %s129 = smul.addr %s128, 4
          %s130 = scalar_lea.vmem [#allocation6], %s129
          %s131 = smul.u32 2, %s23
          %s133 = ssub.s32 64, 64
          %134 = vsyncadd %s127, %s133
          %s135 = smul.addr %s22, 2
          %s136 = sadd.s32 %s131, %s135
          %s137 = smul.addr %s136, 32
          %s138 = scalar_lea.hbm %s0, %s137
          %s140 = sshll.u32 %s130, 4
          %s141 = int_to_ptr.vmem [resolvable:$true] %s140
          %143 = dma.hbm_to_vmem [thread:$0]  %s138, 64, %s141, %s127
        $region20: #{tpu_custom_call.1} parent=15 // pred_fallthru
          _
        // Predicated region
        $region21: #{tpu_custom_call.1} parent=15 // pred_check
          %p144 = pneg %p77
        $region22: #{tpu_custom_call.1} parent=15 // pred_check_branch
          %146 = sbr.rel (%p144) target = $region24
        $region23: #{tpu_custom_call.1} parent=15 // pred_region
          %s147 = sand.u32 %s67, 1
          %s148 = scalar_lea.sflag [#allocation10], %s147
          %s149 = sand.u32 %s67, 1
          %s150 = smul.addr %s149, 4
          %s151 = scalar_lea.vmem [#allocation9], %s150
          %s152 = smul.u32 2, %s23
          %s154 = ssub.s32 64, 64
          %155 = vsyncadd %s148, %s154
          %s156 = smul.addr %s22, 2
          %s157 = sadd.s32 %s152, %s156
          %s158 = smul.addr %s157, 32
          %s159 = scalar_lea.hbm %s1, %s158
          %s161 = sshll.u32 %s151, 4
          %s162 = int_to_ptr.vmem [resolvable:$true] %s161
          %164 = dma.hbm_to_vmem [thread:$0]  %s159, 64, %s162, %s148
        $region24: #{tpu_custom_call.1} parent=15 // pred_fallthru
          _
      $region16: #{tpu_custom_call.1} parent=5 // pred_fallthru
        _
      %p165 = scmp.le.s32.totalorder 1, %s15
      %p166 = scmp.lt.s32.totalorder %s15, 3
      %p167 = pnand %p165, %p166
      %p168 = pneg %p167
      // Predicated region
      $region25: #{tpu_custom_call.1} parent=5 // pred_check
        _
      $region26: #{tpu_custom_call.1} parent=5 // pred_check_branch
        %170 = sbr.rel (%p167) target = $region28
      $region27: #{tpu_custom_call.1} parent=5 // pred_region
        %s171 = ssub.s32 %s15, 1
        %s172 = sand.u32 %s42, 1
        %s173 = scalar_lea.sflag [#allocation7], %s172
        %s174 = sand.u32 %s42, 1
        %s175 = smul.addr %s174, 4
        %s176 = scalar_lea.vmem [#allocation6], %s175
        // Predicated region
        $region29: #{tpu_custom_call.1} parent=27 // pred_check
          %p177 = pneg %p55
        $region30: #{tpu_custom_call.1} parent=27 // pred_check_branch
          %179 = sbr.rel (%p177) target = $region32
        $region31: #{tpu_custom_call.1} parent=27 // pred_region
          %180 = dma.done %s173, 64
        $region32: #{tpu_custom_call.1} parent=27 // pred_fallthru
          _
        %s181 = sand.u32 %s70, 1
        %s182 = scalar_lea.sflag [#allocation10], %s181
        %s183 = sand.u32 %s70, 1
        %s184 = smul.addr %s183, 4
        %s185 = scalar_lea.vmem [#allocation9], %s184
        // Predicated region
        $region33: #{tpu_custom_call.1} parent=27 // pred_check
          %p186 = pneg %p83
        $region34: #{tpu_custom_call.1} parent=27 // pred_check_branch
          %188 = sbr.rel (%p186) target = $region36
        $region35: #{tpu_custom_call.1} parent=27 // pred_region
          %189 = dma.done %s182, 64
        $region36: #{tpu_custom_call.1} parent=27 // pred_fallthru
          _
        %s190 = sand.u32 %s42, 1
        %s191 = scalar_lea.sflag [#allocation7], %s190
        %s192 = sand.u32 %s42, 1
        %s193 = smul.addr %s192, 4
        %s194 = scalar_lea.vmem [#allocation6], %s193
        %p195 = pneg %p55
        %p196 = pneg %p52
        %s197 = sand.u32 %s70, 1
        %s198 = scalar_lea.sflag [#allocation10], %s197
        %s199 = sand.u32 %s70, 1
        %s200 = smul.addr %s199, 4
        %s201 = scalar_lea.vmem [#allocation9], %s200
        %p202 = pneg %p83
        %p203 = pneg %p80
        %p204 = pneg %p104
        %p205 = pneg %p101
        %s206 = smul.u32 2, %s25
        %s207 = smul.u32 2, %s25
        %p208 = scmp.eq.s32.totalorder %s24, 0
        %p209 = scmp.eq.s32.totalorder %s25, 0
        %p210 = pnand %p208, %p209
        %p211 = pneg %p210
        // Predicated region
        $region37: #{tpu_custom_call.1} parent=27 // pred_check
          _
        $region38: #{tpu_custom_call.1} parent=27 // pred_check_branch
          %213 = sbr.rel (%p210) target = $region40
        $region39: #{tpu_custom_call.1} parent=27 // pred_region
          %vm214 = vcmask 64512
          %215 = vst.msk [vmem:[#allocation2] sm:$0xff] %vm214, 0.0
          %s216 = scalar_lea.smem [#allocation5], 0
          %217 = sst [smem:[%s216]] 0.0
        $region40: #{tpu_custom_call.1} parent=27 // pred_fallthru
          _
        // Predicated region
        $region41: #{tpu_custom_call.1} parent=27 // pred_check
          %p218 = pneg %p209
        $region42: #{tpu_custom_call.1} parent=27 // pred_check_branch
          %220 = sbr.rel (%p218) target = $region44
        $region43: #{tpu_custom_call.1} parent=27 // pred_region
          %s221 = scalar_lea.smem [#allocation3], 0
          %222 = sst [smem:[%s221]] 0.0
          %s223 = scalar_lea.smem [#allocation4], 0
          %224 = sst [smem:[%s223]] 0.0
        $region44: #{tpu_custom_call.1} parent=27 // pred_fallthru
          _
        %v225 = vld [vmem:[%s176] sm:$0xf]
        %v226 = vld [vmem:[%s185] sm:$0xf]
        %v228 = vrot.slane %v225, 7
        %vm230 = vcmp.gt.f32.partialorder %v225, %v228
        %v231 = vsel %vm230, 1, 0
        %v233 = vrot.slane %v226, 7
        %vm235 = vcmp.gt.f32.partialorder %v226, %v233
        %v236 = vsel %vm235, 1, 0
        %v237 = vlaneseq
        %v238 = vshrl.u32 %v237, 7
        %v239 = vlaneseq
        %v240 = vshrl.u32 %v239, 7
        %v241 = vsub.s32 1, %v240
        %v242 = vrot.slane %v231, %v241
        %v243 = vlaneseq
        %v244 = vshrl.u32 %v243, 7
        %v245 = vsub.s32 3, %v244
        %v246 = vrot.slane %v231, %v245
        %v247 = vlaneseq
        %v248 = vshrl.u32 %v247, 7
        %v249 = vsub.s32 1, %v248
        %v250 = vrot.slane %v242, %v249
        %v251 = vlaneseq
        %v252 = vshrl.u32 %v251, 7
        %v253 = vsub.s32 1, %v252
        %v254 = vrot.slane %v246, %v253
        %vm255 = vcmp.eq.s32.totalorder %v238, %v250
        %vm256 = vcmp.eq.s32.totalorder %v238, %v254
        %v257 = vsel %vm255, 1, 0
        %v258 = vsel %vm256, 1, 0
        %v259 = vcvt.s32.f32 %v257
        %v260 = vcvt.s32.f32 %v258
        %v261 = vlaneseq
        %v262 = vshrl.u32 %v261, 7
        %v263 = vsub.s32 1, %v262
        %v264 = vrot.slane %v236, %v263
        %v265 = vlaneseq
        %v266 = vshrl.u32 %v265, 7
        %v267 = vsub.s32 3, %v266
        %v268 = vrot.slane %v236, %v267
        %v269 = vlaneseq
        %v270 = vshrl.u32 %v269, 7
        %v271 = vsub.s32 1, %v270
        %v272 = vrot.slane %v264, %v271
        %v273 = vlaneseq
        %v274 = vshrl.u32 %v273, 7
        %v275 = vsub.s32 1, %v274
        %v276 = vrot.slane %v268, %v275
        %vm277 = vcmp.eq.s32.totalorder %v238, %v272
        %vm278 = vcmp.eq.s32.totalorder %v238, %v276
        %v279 = vsel %vm277, 1, 0
        %v280 = vsel %vm278, 1, 0
        %v281 = vcvt.s32.f32 %v279
        %v282 = vcvt.s32.f32 %v280
        %v283 = vld [vmem:[#allocation2] sm:$0xff]
        %284 = vmatprep.subr.mxu0 %v260
        %285 = vmatpush1.xpose.msra.mxu0 %v259
        %286 = vmatprep.subr.mxu0 0.0
        %287 = vmatpush1.xpose.msra.mxu0 0.0
        %288 = vmatprep.subr.mxu0 0.0
        %289 = vmatpush1.xpose.msra.mxu0 0.0
        %290 = vmatprep.subr.mxu0 0.0
        %291 = vmatpush1.xpose.msra.mxu0 0.0
        %292 = vmatprep.subr.mxu0 0.0
        %293 = vmatpush1.xpose.msra.mxu0 0.0
        %294 = vmatprep.subr.mxu0 0.0
        %295 = vmatpush1.xpose.msra.mxu0 0.0
        %296 = vmatprep.subr.mxu0 0.0
        %297 = vmatpush1.xpose.msra.mxu0 0.0
        %298 = vmatprep.subr.mxu0 0.0
        %299 = vmatpush1.xpose.msra.mxu0 0.0
        %300 = vmatprep.subr.mxu0 0.0
        %301 = vmatpush1.xpose.msra.mxu0 0.0
        %302 = vmatprep.subr.mxu0 0.0
        %303 = vmatpush1.xpose.msra.mxu0 0.0
        %304 = vmatprep.subr.mxu0 0.0
        %305 = vmatpush1.xpose.msra.mxu0 0.0
        %306 = vmatprep.subr.mxu0 0.0
        %307 = vmatpush1.xpose.msra.mxu0 0.0
        %308 = vmatprep.subr.mxu0 0.0
        %309 = vmatpush1.xpose.msra.mxu0 0.0
        %310 = vmatprep.subr.mxu0 0.0
        %311 = vmatpush1.xpose.msra.mxu0 0.0
        %312 = vmatprep.subr.mxu0 0.0
        %313 = vmatpush1.xpose.msra.mxu0 0.0
        %314 = vmatprep.subr.mxu0 0.0
        %315 = vmatpush1.xpose.msra.mxu0 0.0
        %316 = vmatprep.subr.mxu0 0.0
        %317 = vmatpush1.xpose.msra.mxu0 0.0
        %318 = vmatprep.subr.mxu0 0.0
        %319 = vmatpush1.xpose.msra.mxu0 0.0
        %320 = vmatprep.subr.mxu0 0.0
        %321 = vmatpush1.xpose.msra.mxu0 0.0
        %322 = vmatprep.subr.mxu0 0.0
        %323 = vmatpush1.xpose.msra.mxu0 0.0
        %324 = vmatprep.subr.mxu0 0.0
        %325 = vmatpush1.xpose.msra.mxu0 0.0
        %326 = vmatprep.subr.mxu0 0.0
        %327 = vmatpush1.xpose.msra.mxu0 0.0
        %328 = vmatprep.subr.mxu0 0.0
        %329 = vmatpush1.xpose.msra.mxu0 0.0
        %330 = vmatprep.subr.mxu0 0.0
        %331 = vmatpush1.xpose.msra.mxu0 0.0
        %332 = vmatprep.subr.mxu0 0.0
        %333 = vmatpush1.xpose.msra.mxu0 0.0
        %334 = vmatprep.subr.mxu0 0.0
        %335 = vmatpush1.xpose.msra.mxu0 0.0
        %336 = vmatprep.subr.mxu0 0.0
        %337 = vmatpush1.xpose.msra.mxu0 0.0
        %338 = vmatprep.subr.mxu0 0.0
        %339 = vmatpush1.xpose.msra.mxu0 0.0
        %340 = vmatprep.subr.mxu0 0.0
        %341 = vmatpush1.xpose.msra.mxu0 0.0
        %342 = vmatprep.subr.mxu0 0.0
        %343 = vmatpush1.xpose.msra.mxu0 0.0
        %344 = vmatprep.subr.mxu0 0.0
        %345 = vmatpush1.xpose.msra.mxu0 0.0
        %346 = vmatprep.subr.mxu0 0.0
        %347 = vmatpush1.xpose.msra.mxu0 0.0
        %348 = vmatprep.mubr.f32.mxu0 %v282
        %349 = vmatmul.mubr.f32.gmra.mrb[0].mxu0 %v281
        %v350 = vpop.f32.mrb[0].mxu0
        %v351 = vadd.f32 0.0, %v350
        %v352 = vpop.f32.mrb[0].mxu0
        %353 = vdwg.mxu0
        %v354 = vadd.f32 %v283, %v351
        %vm355 = vcmask 64512
        %356 = vst.msk [vmem:[#allocation2] sm:$0xff] %vm355, %v354
        %s357 = sld [smem:[#allocation3]]
        %v358 = vmul.f32 %v225, %v226
        %v361 = vunpack.c.l.s4 1983009808
        %v362 = vunpack.c.0.s8 %v361
        %v363 = vlaneseq
        %v364 = vshrl.u32 %v363, 7
        %v365 = vsub.s32 %v362, %v364
        %v366 = vrot.slane %v358, %v365
        %v367 = vcombine.high %v366, %v366
        %vm370 = vcmask 1041408
        %v371 = vsel %vm370, %v366, 0.0
        %v372 = vsel %vm370, %v367, 0.0
        %v373 = vadd.f32 %v371, %v372
        %374 = vadd.xlane.f32.xlu0 %v373
        %v375 = vpop.xlane.xlu0 %374
        %v376 = vrot.slane %v375, 4
        %v377 = vadd.f32 %v375, %v376
        %v378 = vrot.slane %v377, 2
        %v379 = vadd.f32 %v377, %v378
        %v380 = vrot.slane %v379, 1
        %v381 = vadd.f32 %v379, %v380
        %s382 = vtos %v381
        %s383 = sadd.f32 %s357, %s382
        %s384 = scalar_lea.smem [#allocation3], 0
        %385 = sst [smem:[%s384]] %s383
        %s386 = sld [smem:[#allocation4]]
        %v387 = vadd.f32 %v225, %v226
        %v390 = vunpack.c.l.s4 1983009808
        %v391 = vunpack.c.0.s8 %v390
        %v392 = vlaneseq
        %v393 = vshrl.u32 %v392, 7
        %v394 = vsub.s32 %v391, %v393
        %v395 = vrot.slane %v387, %v394
        %v396 = vcombine.high %v395, %v395
        %v399 = vsel %vm370, %v395, 0.0
        %v400 = vsel %vm370, %v396, 0.0
        %v401 = vadd.f32 %v399, %v400
        %402 = vadd.xlane.f32.xlu0 %v401
        %v403 = vpop.xlane.xlu0 %402
        %v404 = vrot.slane %v403, 4
        %v405 = vadd.f32 %v403, %v404
        %v406 = vrot.slane %v405, 2
        %v407 = vadd.f32 %v405, %v406
        %v408 = vrot.slane %v407, 1
        %v409 = vadd.f32 %v407, %v408
        %s410 = vtos %v409
        %s411 = sadd.f32 %s386, %s410
        %s412 = scalar_lea.smem [#allocation4], 0
        %413 = sst [smem:[%s412]] %s411
        // Predicated region
        $region45: #{tpu_custom_call.1} parent=27 // pred_check
          %p414 = pneg %p209
        $region46: #{tpu_custom_call.1} parent=27 // pred_check_branch
          %416 = sbr.rel (%p414) target = $region48
        $region47: #{tpu_custom_call.1} parent=27 // pred_region
          %s417 = sld [smem:[#allocation5]]
          %s418 = sld [smem:[#allocation3]]
          %s419 = smul.f32 %s418, 2.0
          %s420 = sadd.f32 %s419, 1e-05
          %s421 = sld [smem:[#allocation4]]
          %s422 = sadd.f32 %s421, 1e-05
          %v423 = vstv %s422
          %v424 = vrcp.pop %v423
          %s425 = vtos %v424
          %s426 = smul.f32 %s420, %s425
          %s427 = sadd.f32 %s417, %s426
          %s428 = scalar_lea.smem [#allocation5], 0
          %429 = sst [smem:[%s428]] %s427
        $region48: #{tpu_custom_call.1} parent=27 // pred_fallthru
          _
        %p430 = scmp.eq.s32.totalorder %s24, 1
        %p431 = pnand %p430, %p209
        %p432 = pneg %p431
        // Predicated region
        $region49: #{tpu_custom_call.1} parent=27 // pred_check
          _
        $region50: #{tpu_custom_call.1} parent=27 // pred_check_branch
          %434 = sbr.rel (%p431) target = $region52
        $region51: #{tpu_custom_call.1} parent=27 // pred_region
          %v435 = vld [vmem:[#allocation2] sm:$0xff]
          %v436 = vlaneseq
          %v437 = vand.u32 %v436, 127
          %vm438 = vcmp.eq.s32.totalorder %v238, %v437
          %v439 = vsel %vm355, %v435, 0.0
          %440 = vadd.xlane.f32.xlu0 %v439
          %v441 = vpop.xlane.xlu0 %440
          %v442 = vrot.slane %v439, 4
          %v443 = vadd.f32 %v439, %v442
          %v444 = vrot.slane %v443, 2
          %v445 = vadd.f32 %v443, %v444
          %v446 = vrot.slane %v445, 1
          %v447 = vadd.f32 %v445, %v446
          %v448 = vsel %vm438, %v435, 0.0
          %v449 = vsel %vm355, %v448, 0.0
          %v450 = vrot.slane %v449, 4
          %v451 = vadd.f32 %v449, %v450
          %v452 = vrot.slane %v451, 2
          %v453 = vadd.f32 %v451, %v452
          %v454 = vrot.slane %v453, 1
          %v455 = vadd.f32 %v453, %v454
          %v456 = vadd.f32 %v441, %v447
          %v457 = vsub.f32 %v456, %v435
          %v458 = vsel %vm438, %v457, 0.0
          %v459 = vsel %vm355, %v458, 0.0
          %v460 = vrot.slane %v459, 4
          %v461 = vadd.f32 %v459, %v460
          %v462 = vrot.slane %v461, 2
          %v463 = vadd.f32 %v461, %v462
          %v464 = vrot.slane %v463, 1
          %v465 = vadd.f32 %v463, %v464
          %vm466 = vcmp.lt.s32.totalorder %v437, 2
          %vm467 = vcmp.gt.f32.partialorder %v465, 0.0
          %vm468 = vmand %vm466, %vm467
          %v469 = vsel %vm468, %v465, 1.0
          %v470 = vrcp.pop %v469
          %v471 = vmul.f32 %v455, %v470
          %v472 = vsel %vm468, %v471, 0.0
          %vm473 = vcmask 57344
          %v474 = vsel %vm473, %v472, 0.0
          %475 = vadd.xlane.f32.xlu0 %v474
          %v476 = vpop.xlane.xlu0 %475
          %v477 = vrot.slane %v476, 4
          %v478 = vadd.f32 %v476, %v477
          %v479 = vrot.slane %v478, 2
          %v480 = vadd.f32 %v478, %v479
          %v481 = vrot.slane %v480, 1
          %v482 = vadd.f32 %v480, %v481
          %s483 = vtos %v482
          %v484 = vsel %vm468, 1.0, 0.0
          %v485 = vsel %vm473, %v484, 0.0
          %486 = vadd.xlane.f32.xlu0 %v485
          %v487 = vpop.xlane.xlu0 %486
          %v488 = vrot.slane %v487, 4
          %v489 = vadd.f32 %v487, %v488
          %v490 = vrot.slane %v489, 2
          %v491 = vadd.f32 %v489, %v490
          %v492 = vrot.slane %v491, 1
          %v493 = vadd.f32 %v491, %v492
          %s494 = vtos %v493
          %v495 = vstv %s494
          %v496 = vrcp.pop %v495
          %s497 = vtos %v496
          %s498 = smul.f32 %s483, %s497
          %s499 = ssub.f32 1.0, %s498
          %s500 = sld [smem:[#allocation5]]
          %v501 = vrcp.pop 2.0
          %s502 = vtos %v501
          %s503 = smul.f32 %s500, %s502
          %s504 = ssub.f32 1.0, %s503
          %s505 = sadd.f32 %s499, %s504
          %s506 = scalar_lea.smem [#allocation11], 0
          %507 = sst [smem:[%s506]] %s505
        $region52: #{tpu_custom_call.1} parent=27 // pred_fallthru
          _
        // Predicated region
        $region53: #{tpu_custom_call.1} parent=27 // pred_check
          %p508 = pneg %p101
        $region54: #{tpu_custom_call.1} parent=27 // pred_check_branch
          %510 = sbr.rel (%p508) target = $region56
        $region55: #{tpu_custom_call.1} parent=27 // pred_region
          %s512 = ssub.s32 16, 16
          %513 = vsyncadd [#allocation8], %s512
          %516 = dma.smem_to_hbm [#allocation11], 16, %s2, [#allocation8]
        $region56: #{tpu_custom_call.1} parent=27 // pred_fallthru
          _
        // Predicated region
        $region57: #{tpu_custom_call.1} parent=27 // pred_check
          %p517 = pneg %p101
        $region58: #{tpu_custom_call.1} parent=27 // pred_check_branch
          %519 = sbr.rel (%p517) target = $region60
        $region59: #{tpu_custom_call.1} parent=27 // pred_region
          %520 = dma.done [#allocation8], 16
        $region60: #{tpu_custom_call.1} parent=27 // pred_fallthru
          _
        %521 = sfence
      $region28: #{tpu_custom_call.1} parent=5 // pred_fallthru
        _
      %p522 = scmp.le.s32.totalorder 2, %s15
      // Predicated region
      $region61: #{tpu_custom_call.1} parent=5 // pred_check
        %p523 = pneg %p522
      $region62: #{tpu_custom_call.1} parent=5 // pred_check_branch
        %525 = sbr.rel (%p523) target = $region64
      $region63: #{tpu_custom_call.1} parent=5 // pred_region
        %s526 = ssub.s32 %s15, 2
      $region64: #{tpu_custom_call.1} parent=5 // pred_fallthru
        _
    $region6: #{tpu_custom_call.1} parent=1 // loop_footer
      %s19 = sadd.s32 1, %s15
    $region7: #{tpu_custom_call.1} parent=1 // loop_footer_branch
      %14 = sbr.rel target = $region3
    $region8: #{tpu_custom_call.1} parent=1 // loop_exit
      _
    %527 = vsyncpa [#allocation7], 1
    %s528 = scalar_lea.sflag [#allocation7], 1
    %529 = vsyncpa %s528, 1
    %530 = vsyncpa [#allocation10], 1
    %s531 = scalar_lea.sflag [#allocation10], 1
    %532 = vsyncpa %s531, 1
    %533 = vsyncpa [#allocation8], 1
    %s534 = scalar_lea.sflag [#allocation8], 1
    %535 = vsyncpa %s534, 1

</llo_original>
